<compile_context>
chip_gen: v7x
topology: tpu7x:2x2x1
jax: 0.10.0
libtpu: 0.0.40
codegen_flags: <defaults>
</compile_context>

<pallas_src>
import functools

import jax
import jax.numpy as jnp
from jax.experimental import pallas as pl
from jax.experimental.pallas import tpu as pltpu

_NEG_BIG = -1e30  # "minus infinity" bias for padded action logits (kept f32)


def _round_up(n, m):
    return ((n + m - 1) // m) * m


def actor_mlp_kernel(x_ref, w1_ref, b1_ref, w2_ref, b2_ref, w3_ref, b3_ref,
                     out_ref, *, bf16_act):
    x = x_ref[...]                                   # [TB, D_in]
    if bf16_act:
        x = x.astype(jnp.bfloat16)

    # Linear -> Tanh.  Accumulate in f32; on the bf16 path run tanh in bf16
    # (packed EUP on v6e/v7x) which also feeds the next MXU pass directly.
    z1 = jnp.dot(x, w1_ref[...], preferred_element_type=jnp.float32) + b1_ref[...]
    h1 = jnp.tanh(z1.astype(jnp.bfloat16)) if bf16_act else jnp.tanh(z1)

    # Linear -> Tanh
    z2 = jnp.dot(h1, w2_ref[...], preferred_element_type=jnp.float32) + b2_ref[...]
    h2 = jnp.tanh(z2.astype(jnp.bfloat16)) if bf16_act else jnp.tanh(z2)

    # Out (Linear).  Padded action columns carry bias -1e30 -> exp() == 0.
    logits = (jnp.dot(h2, w3_ref[...], preferred_element_type=jnp.float32)
              + b3_ref[...])

    # Numerically stable softmax over the action (last) axis, f32 throughout.
    # Exact divide so every row sums to 1.0 (approx reciprocal was not enough).
    m = jnp.max(logits, axis=-1, keepdims=True)
    e = jnp.exp(logits - m)
    denom = jnp.sum(e, axis=-1, keepdims=True)
    out_ref[...] = (e / denom).astype(out_ref.dtype)


def prepare_actor_params(params, *, use_bf16=False):
    """One-time param prep: lane-pad the action axis to a multiple of 128 and
    optionally pre-cast weights (never biases) to bf16.  Do this once and
    reuse the result across forward calls."""
    w1, b1, w2, b2, w3, b3 = params
    n_actions = w3.shape[1]
    a_pad = _round_up(n_actions, 128)
    if a_pad != n_actions:
        w3 = jnp.pad(w3, ((0, 0), (0, a_pad - n_actions)))
        b3 = jnp.pad(b3, ((0, 0), (0, a_pad - n_actions)),
                     constant_values=_NEG_BIG)
    if use_bf16:
        # Weights only; biases (esp. the -1e30 pad in b3) must stay f32.
        w1 = w1.astype(jnp.bfloat16)
        w2 = w2.astype(jnp.bfloat16)
        w3 = w3.astype(jnp.bfloat16)
    return (w1, b1, w2, b2, w3, b3), n_actions


def actor_forward(x, prepared_params, n_actions, *, block_b=512):
    """Fused actor MLP (Linear-Tanh-Linear-Tanh-Out-Softmax), batch-tiled."""
    w1, b1, w2, b2, w3, b3 = prepared_params
    B, d_in = x.shape
    h1 = w1.shape[1]
    h2 = w2.shape[1]
    a_pad = w3.shape[1]
    bf16_act = (w1.dtype == jnp.bfloat16)

    # Batch tile: one tile for small batches (grid=(1,), no batch-pad copy),
    # block_b-row tiles for large batches (DMA-efficient, still tiny in VMEM).
    tb = min(_round_up(block_b, 8), _round_up(B, 8))
    b_pad = _round_up(B, tb)
    xp = jnp.pad(x, ((0, b_pad - B), (0, 0))) if b_pad != B else x
    grid = (b_pad // tb,)

    # Weights / biases: full-array blocks with constant index maps -> DMA'd
    # once and kept VMEM-resident across all batch tiles.
    const2 = lambda i: (0, 0)
    in_specs = [
        pl.BlockSpec((tb, d_in), lambda i: (i, 0)),      # states (tiled)
        pl.BlockSpec((d_in, h1), const2),                # W1
        pl.BlockSpec((1, h1), const2),                   # b1
        pl.BlockSpec((h1, h2), const2),                  # W2
        pl.BlockSpec((1, h2), const2),                   # b2
        pl.BlockSpec((h2, a_pad), const2),               # W3 (lane-padded)
        pl.BlockSpec((1, a_pad), const2),                # b3 (lane-padded)
    ]
    out_specs = pl.BlockSpec((tb, a_pad), lambda i: (i, 0))

    kernel = functools.partial(actor_mlp_kernel, bf16_act=bf16_act)

    probs_pad = pl.pallas_call(
        kernel,
        out_shape=jax.ShapeDtypeStruct((b_pad, a_pad), jnp.float32),
        grid=grid,
        in_specs=in_specs,
        out_specs=out_specs,
        compiler_params=pltpu.CompilerParams(
            dimension_semantics=("parallel",)),
    )(xp, w1, b1, w2, b2, w3, b3)

    # Strip batch/action padding back to the logical shape.
    return probs_pad[:B, :n_actions]


def init_params(key, d_in, hidden, n_actions):
    """Deterministic synthetic init mirroring weight_bias_initializer:
    gain-scaled weights + zero biases.  Weights stored [in, out]."""
    k1, k2, k3 = jax.random.split(key, 3)
    gain = 5.0 / 3.0  # nn.init.calculate_gain('tanh')

    def w(k, fan_in, fan_out):
        return (gain / jnp.sqrt(fan_in)) * jax.random.normal(
            k, (fan_in, fan_out), dtype=jnp.float32)

    return (w(k1, d_in, hidden), jnp.zeros((1, hidden), jnp.float32),
            w(k2, hidden, hidden), jnp.zeros((1, hidden), jnp.float32),
            w(k3, hidden, n_actions), jnp.zeros((1, n_actions), jnp.float32))


def reference_forward(x, params):
    w1, b1, w2, b2, w3, b3 = params
    h1 = jnp.tanh(x @ w1 + b1)
    h2 = jnp.tanh(h1 @ w2 + b2)
    logits = h2 @ w3 + b3
    return jax.nn.softmax(logits, axis=1)


if __name__ == "__main__":
    # Rollout-style shapes: 200 states of dim 32, hidden 64, 8 discrete actions.
    B, D_IN, HIDDEN, N_ACTIONS = 200, 32, 64, 8

    key = jax.random.PRNGKey(0)
    k_x, k_p = jax.random.split(key)
    states = jax.random.normal(k_x, (B, D_IN), dtype=jnp.float32)
    params = init_params(k_p, D_IN, HIDDEN, N_ACTIONS)

    ref = reference_forward(states, params)

    # --- f32 path (all generations), single batch tile: grid=(1,) -----------
    prep_f32, n_act = prepare_actor_params(params, use_bf16=False)
    probs = jax.block_until_ready(actor_forward(states, prep_f32, n_act))
    assert probs.shape == (B, N_ACTIONS)
    assert jnp.allclose(probs, ref, atol=1e-3, rtol=1e-3)
    assert jnp.allclose(jnp.sum(probs, axis=1), 1.0, atol=1e-3)

    # --- multi-tile path (exercise batch padding + grid=(2,)) ---------------
    probs_mt = jax.block_until_ready(
        actor_forward(states, prep_f32, n_act, block_b=128))
    assert probs_mt.shape == (B, N_ACTIONS)
    assert jnp.allclose(probs_mt, ref, atol=1e-3, rtol=1e-3)
    assert jnp.allclose(jnp.sum(probs_mt, axis=1), 1.0, atol=1e-3)

    # --- bf16 weight/tanh path (v6e/v7x; keep use_bf16=False on v5e) --------
    prep_bf16, _ = prepare_actor_params(params, use_bf16=True)
    probs_bf16 = jax.block_until_ready(actor_forward(states, prep_bf16, n_act))
    assert probs_bf16.shape == (B, N_ACTIONS)
    assert jnp.allclose(probs_bf16, ref, atol=3e-2, rtol=3e-2)
    assert jnp.allclose(jnp.sum(probs_bf16, axis=1), 1.0, atol=1e-3)

    print("KERNEL_OK")
</pallas_src>

<mosaic_0001>
module attributes {stable_mosaic.version = 11 : i64} {
  func.func @actor_mlp_kernel(%arg0: i32, %arg1: memref<200x32xf32, #tpu.memory_space<vmem>>, %arg2: memref<32x64xf32, #tpu.memory_space<vmem>>, %arg3: memref<1x64xf32, #tpu.memory_space<vmem>>, %arg4: memref<64x64xf32, #tpu.memory_space<vmem>>, %arg5: memref<1x64xf32, #tpu.memory_space<vmem>>, %arg6: memref<64x128xf32, #tpu.memory_space<vmem>>, %arg7: memref<1x128xf32, #tpu.memory_space<vmem>>, %arg8: memref<200x128xf32, #tpu.memory_space<vmem>>) attributes {dimension_semantics = [#tpu.dimension_semantics<parallel>], iteration_bounds = array<i64: 1>, scalar_prefetch = 0 : i64, scratch_operands = 0 : i64, tpu.core_type = #tpu.core_type<tc>, window_params = [{transform_indices = @transform_0, window_bounds = array<i64: 200, 32>}, {pipeline_mode = #tpu.pipeline_mode<synchronous>, transform_indices = @transform_1, window_bounds = array<i64: 32, 64>}, {pipeline_mode = #tpu.pipeline_mode<synchronous>, transform_indices = @transform_2, window_bounds = array<i64: 1, 64>}, {pipeline_mode = #tpu.pipeline_mode<synchronous>, transform_indices = @transform_3, window_bounds = array<i64: 64, 64>}, {pipeline_mode = #tpu.pipeline_mode<synchronous>, transform_indices = @transform_4, window_bounds = array<i64: 1, 64>}, {pipeline_mode = #tpu.pipeline_mode<synchronous>, transform_indices = @transform_5, window_bounds = array<i64: 64, 128>}, {pipeline_mode = #tpu.pipeline_mode<synchronous>, transform_indices = @transform_6, window_bounds = array<i64: 1, 128>}, {transform_indices = @transform_7, window_bounds = array<i64: 200, 128>}]} {
    %c0 = arith.constant 0 : index
    %c0_0 = arith.constant 0 : index
    %0 = vector.load %arg1[%c0, %c0_0] : memref<200x32xf32, #tpu.memory_space<vmem>>, vector<200x32xf32>
    %c0_1 = arith.constant 0 : index
    %c0_2 = arith.constant 0 : index
    %1 = vector.load %arg2[%c0_1, %c0_2] : memref<32x64xf32, #tpu.memory_space<vmem>>, vector<32x64xf32>
    %cst = arith.constant dense<0.000000e+00> : vector<200x64xf32>
    %2 = tpu.matmul %0, %1, %cst {dimension_numbers = #tpu.dot_dimension_numbers<[1], [0], [0], [1], [0, 0, 1, 1], [], []>} : vector<200x32xf32>, vector<32x64xf32>, vector<200x64xf32> -> vector<200x64xf32>
    %c0_3 = arith.constant 0 : index
    %c0_4 = arith.constant 0 : index
    %3 = vector.load %arg3[%c0_3, %c0_4] : memref<1x64xf32, #tpu.memory_space<vmem>>, vector<1x64xf32>
    %4 = vector.broadcast %3 : vector<1x64xf32> to vector<200x64xf32>
    %5 = arith.addf %2, %4 : vector<200x64xf32>
    %6 = math.tanh %5 : vector<200x64xf32>
    %c0_5 = arith.constant 0 : index
    %c0_6 = arith.constant 0 : index
    %7 = vector.load %arg4[%c0_5, %c0_6] : memref<64x64xf32, #tpu.memory_space<vmem>>, vector<64x64xf32>
    %cst_7 = arith.constant dense<0.000000e+00> : vector<200x64xf32>
    %8 = tpu.matmul %6, %7, %cst_7 {dimension_numbers = #tpu.dot_dimension_numbers<[1], [0], [0], [1], [0, 0, 1, 1], [], []>} : vector<200x64xf32>, vector<64x64xf32>, vector<200x64xf32> -> vector<200x64xf32>
    %c0_8 = arith.constant 0 : index
    %c0_9 = arith.constant 0 : index
    %9 = vector.load %arg5[%c0_8, %c0_9] : memref<1x64xf32, #tpu.memory_space<vmem>>, vector<1x64xf32>
    %10 = vector.broadcast %9 : vector<1x64xf32> to vector<200x64xf32>
    %11 = arith.addf %8, %10 : vector<200x64xf32>
    %12 = math.tanh %11 : vector<200x64xf32>
    %c0_10 = arith.constant 0 : index
    %c0_11 = arith.constant 0 : index
    %13 = vector.load %arg6[%c0_10, %c0_11] : memref<64x128xf32, #tpu.memory_space<vmem>>, vector<64x128xf32>
    %cst_12 = arith.constant dense<0.000000e+00> : vector<200x128xf32>
    %14 = tpu.matmul %12, %13, %cst_12 {dimension_numbers = #tpu.dot_dimension_numbers<[1], [0], [0], [1], [0, 0, 1, 1], [], []>} : vector<200x64xf32>, vector<64x128xf32>, vector<200x128xf32> -> vector<200x128xf32>
    %c0_13 = arith.constant 0 : index
    %c0_14 = arith.constant 0 : index
    %15 = vector.load %arg7[%c0_13, %c0_14] : memref<1x128xf32, #tpu.memory_space<vmem>>, vector<1x128xf32>
    %16 = vector.broadcast %15 : vector<1x128xf32> to vector<200x128xf32>
    %17 = arith.addf %14, %16 : vector<200x128xf32>
    %cst_15 = arith.constant dense<0xFF800000> : vector<200xf32>
    %18 = vector.multi_reduction <maximumf>, %17, %cst_15 [1] : vector<200x128xf32> to vector<200xf32>
    %19 = vector.shape_cast %18 : vector<200xf32> to vector<200x1xf32>
    %20 = vector.broadcast %19 : vector<200x1xf32> to vector<200x128xf32>
    %21 = arith.subf %17, %20 : vector<200x128xf32>
    %22 = math.exp %21 : vector<200x128xf32>
    %cst_16 = arith.constant dense<0.000000e+00> : vector<200xf32>
    %23 = vector.multi_reduction <add>, %22, %cst_16 [1] : vector<200x128xf32> to vector<200xf32>
    %24 = vector.shape_cast %23 : vector<200xf32> to vector<200x1xf32>
    %25 = vector.broadcast %24 : vector<200x1xf32> to vector<200x128xf32>
    %26 = arith.divf %22, %25 : vector<200x128xf32>
    %c0_17 = arith.constant 0 : index
    %c0_18 = arith.constant 0 : index
    %27 = vector.load %arg8[%c0_17, %c0_18] : memref<200x128xf32, #tpu.memory_space<vmem>>, vector<200x128xf32>
    tpu.vector_store %arg8[%c0_17, %c0_18], %26 {strides = array<i32>} : memref<200x128xf32, #tpu.memory_space<vmem>>, vector<200x128xf32>,
    return
  }
  func.func @transform_0(%arg0: i32) -> (i32, i32) {
    %c0_i32 = arith.constant 0 : i32
    %c0_i32_0 = arith.constant 0 : i32
    return %arg0, %c0_i32 : i32, i32
  }
  func.func @transform_1(%arg0: i32) -> (i32, i32) {
    %c0_i32 = arith.constant 0 : i32
    %c0_i32_0 = arith.constant 0 : i32
    %c0_i32_1 = arith.constant 0 : i32
    return %c0_i32, %c0_i32_0 : i32, i32
  }
  func.func @transform_2(%arg0: i32) -> (i32, i32) {
    %c0_i32 = arith.constant 0 : i32
    %c0_i32_0 = arith.constant 0 : i32
    %c0_i32_1 = arith.constant 0 : i32
    return %c0_i32, %c0_i32_0 : i32, i32
  }
  func.func @transform_3(%arg0: i32) -> (i32, i32) {
    %c0_i32 = arith.constant 0 : i32
    %c0_i32_0 = arith.constant 0 : i32
    %c0_i32_1 = arith.constant 0 : i32
    return %c0_i32, %c0_i32_0 : i32, i32
  }
  func.func @transform_4(%arg0: i32) -> (i32, i32) {
    %c0_i32 = arith.constant 0 : i32
    %c0_i32_0 = arith.constant 0 : i32
    %c0_i32_1 = arith.constant 0 : i32
    return %c0_i32, %c0_i32_0 : i32, i32
  }
  func.func @transform_5(%arg0: i32) -> (i32, i32) {
    %c0_i32 = arith.constant 0 : i32
    %c0_i32_0 = arith.constant 0 : i32
    %c0_i32_1 = arith.constant 0 : i32
    return %c0_i32, %c0_i32_0 : i32, i32
  }
  func.func @transform_6(%arg0: i32) -> (i32, i32) {
    %c0_i32 = arith.constant 0 : i32
    %c0_i32_0 = arith.constant 0 : i32
    %c0_i32_1 = arith.constant 0 : i32
    return %c0_i32, %c0_i32_0 : i32, i32
  }
  func.func @transform_7(%arg0: i32) -> (i32, i32) {
    %c0_i32 = arith.constant 0 : i32
    %c0_i32_0 = arith.constant 0 : i32
    return %arg0, %c0_i32 : i32, i32
  }
}

</mosaic_0001>

<llo_original>
// kernel: tpu_custom_call.1
$region0: #{tpu_custom_call.1}
  #allocation0 [shape = 'u32[]', space=smem, size = 0x4, offset = 0x4, fixed_abs, tag = 'smem constant byte address 0x4 - core index']
  #allocation1 [shape = 'u32[144,128]{1,0:T(1,128)}', space=vmem, size = 0x12000, scoped, tag = 'internal scratch']
  %s0 = inlined_call_operand.vmem [shape: f32[200,32], index: 0, kind: input, shape index: {}]
  %s1 = inlined_call_operand.vmem [shape: f32[32,64], index: 1, kind: input, shape index: {}]
  %s2 = inlined_call_operand.vmem [shape: f32[1,64], index: 2, kind: input, shape index: {}]
  %s3 = inlined_call_operand.vmem [shape: f32[64,64], index: 3, kind: input, shape index: {}]
  %s4 = inlined_call_operand.vmem [shape: f32[1,64], index: 4, kind: input, shape index: {}]
  %s5 = inlined_call_operand.vmem [shape: f32[64,128], index: 5, kind: input, shape index: {}]
  %s6 = inlined_call_operand.vmem [shape: f32[1,128], index: 6, kind: input, shape index: {}]
  %s7 = inlined_call_operand.hbm [shape: f32[200,128], index: 7, kind: output, shape index: {}]
  %s8 = sld [smem:[#allocation0]]
  $region38: #{tpu_custom_call.1} parent=0
    _
  %s10 = ssub.s32 1, %s8
  %s11 = scalar_select 0, %s10, %s8
  $region1: #{tpu_custom_call.1} parent=0
    #allocation2 [shape = 'u8[102400]{0}', space=vmem, size = 0x19000, scoped, tag = 'output window, operand 0, single buffered']
    #allocation3 [shape = 's32[1]{0}', space=sflag, size = 0x4, scoped, tag = 'scoped memory for tpu_custom_call.1']
    %12 = vsyncpa [#allocation3], 0
    // Predicated region
    $region2: #{tpu_custom_call.1} parent=1 // pred_check
      _
    $region3: #{tpu_custom_call.1} parent=1 // pred_check_branch
      %14 = sbr.rel (0) target = $region5
    $region4: #{tpu_custom_call.1} parent=1 // pred_region
      _
    $region5: #{tpu_custom_call.1} parent=1 // pred_fallthru
      _
    // Predicated region
    $region6: #{tpu_custom_call.1} parent=1 // pred_check
      _
    $region7: #{tpu_custom_call.1} parent=1 // pred_check_branch
      %16 = sbr.rel (0) target = $region9
    $region8: #{tpu_custom_call.1} parent=1 // pred_region
      _
    $region9: #{tpu_custom_call.1} parent=1 // pred_fallthru
      _
    // Predicated region
    $region10: #{tpu_custom_call.1} parent=1 // pred_check
      _
    $region11: #{tpu_custom_call.1} parent=1 // pred_check_branch
      %18 = sbr.rel (0) target = $region13
    $region12: #{tpu_custom_call.1} parent=1 // pred_region
      _
    $region13: #{tpu_custom_call.1} parent=1 // pred_fallthru
      _
    // Predicated region
    $region14: #{tpu_custom_call.1} parent=1 // pred_check
      _
    $region15: #{tpu_custom_call.1} parent=1 // pred_check_branch
      %20 = sbr.rel (0) target = $region17
    $region16: #{tpu_custom_call.1} parent=1 // pred_region
      _
    $region17: #{tpu_custom_call.1} parent=1 // pred_fallthru
      _
    // Predicated region
    $region18: #{tpu_custom_call.1} parent=1 // pred_check
      _
    $region19: #{tpu_custom_call.1} parent=1 // pred_check_branch
      %22 = sbr.rel (0) target = $region21
    $region20: #{tpu_custom_call.1} parent=1 // pred_region
      _
    $region21: #{tpu_custom_call.1} parent=1 // pred_fallthru
      _
    // Predicated region
    $region22: #{tpu_custom_call.1} parent=1 // pred_check
      _
    $region23: #{tpu_custom_call.1} parent=1 // pred_check_branch
      %24 = sbr.rel (0) target = $region25
    $region24: #{tpu_custom_call.1} parent=1 // pred_region
      _
    $region25: #{tpu_custom_call.1} parent=1 // pred_fallthru
      _
    // Predicated region
    $region26: #{tpu_custom_call.1} parent=1 // pred_check
      _
    $region27: #{tpu_custom_call.1} parent=1 // pred_check_branch
      %26 = sbr.rel (0) target = $region29
    $region28: #{tpu_custom_call.1} parent=1 // pred_region
      _
    $region29: #{tpu_custom_call.1} parent=1 // pred_fallthru
      _
    %v27 = vld [vmem:[%s0] sm:$0xff]
    %v28 = vld [vmem:[%s0 + $0x8] sm:$0xff]
    %v29 = vld [vmem:[%s0 + $0x10] sm:$0xff]
    %v30 = vld [vmem:[%s0 + $0x18] sm:$0xff]
    %v31 = vld [vmem:[%s0 + $0x20] sm:$0xff]
    %v32 = vld [vmem:[%s0 + $0x28] sm:$0xff]
    %v33 = vld [vmem:[%s0 + $0x30] sm:$0xff]
    %v34 = vld [vmem:[%s0 + $0x38] sm:$0xff]
    %v35 = vld [vmem:[%s0 + $0x40] sm:$0xff]
    %v36 = vld [vmem:[%s0 + $0x48] sm:$0xff]
    %v37 = vld [vmem:[%s0 + $0x50] sm:$0xff]
    %v38 = vld [vmem:[%s0 + $0x58] sm:$0xff]
    %v39 = vld [vmem:[%s0 + $0x60] sm:$0xff]
    %v40 = vld [vmem:[%s0 + $0x68] sm:$0xff]
    %v41 = vld [vmem:[%s0 + $0x70] sm:$0xff]
    %v42 = vld [vmem:[%s0 + $0x78] sm:$0xff]
    %v43 = vld [vmem:[%s0 + $0x80] sm:$0xff]
    %v44 = vld [vmem:[%s0 + $0x88] sm:$0xff]
    %v45 = vld [vmem:[%s0 + $0x90] sm:$0xff]
    %v46 = vld [vmem:[%s0 + $0x98] sm:$0xff]
    %v47 = vld [vmem:[%s0 + $0xa0] sm:$0xff]
    %v48 = vld [vmem:[%s0 + $0xa8] sm:$0xff]
    %v49 = vld [vmem:[%s0 + $0xb0] sm:$0xff]
    %v50 = vld [vmem:[%s0 + $0xb8] sm:$0xff]
    %v51 = vld [vmem:[%s0 + $0xc0] sm:$0xff]
    %v52 = vld [vmem:[%s1] sm:$0xff]
    %v53 = vld [vmem:[%s1 + $0x8] sm:$0xff]
    %v54 = vld [vmem:[%s1 + $0x10] sm:$0xff]
    %v55 = vld [vmem:[%s1 + $0x18] sm:$0xff]
    %v56 = vld [vmem:[%s2] sm:$0x1]
    %v58 = vlaneseq
    %v59 = vshrl.u32 %v58, 7
    %v60 = vsub.s32 0, %v59
    %v61 = vrot.slane %v56, %v60
    %vm63 = vcmask 261120
    %v65 = vsel %vm63, %v27, 0
    %v68 = vsel %vm63, %v28, 0
    %v71 = vsel %vm63, %v29, 0
    %v74 = vsel %vm63, %v30, 0
    %v77 = vsel %vm63, %v31, 0
    %v80 = vsel %vm63, %v32, 0
    %v83 = vsel %vm63, %v33, 0
    %v86 = vsel %vm63, %v34, 0
    %v89 = vsel %vm63, %v35, 0
    %v92 = vsel %vm63, %v36, 0
    %v95 = vsel %vm63, %v37, 0
    %v98 = vsel %vm63, %v38, 0
    %v101 = vsel %vm63, %v39, 0
    %v104 = vsel %vm63, %v40, 0
    %v107 = vsel %vm63, %v41, 0
    %v110 = vsel %vm63, %v42, 0
    %v113 = vsel %vm63, %v43, 0
    %v116 = vsel %vm63, %v44, 0
    %v119 = vsel %vm63, %v45, 0
    %v122 = vsel %vm63, %v46, 0
    %v125 = vsel %vm63, %v47, 0
    %v128 = vsel %vm63, %v48, 0
    %v131 = vsel %vm63, %v49, 0
    %v134 = vsel %vm63, %v50, 0
    %v137 = vsel %vm63, %v51, 0
    %139 = vmatprep.subr.mxu0 0.0
    %140 = vmatpush1.msra.mxu0 %v52
    %141 = vmatprep.subr.mxu0 0.0
    %142 = vmatpush1.msra.mxu0 %v53
    %143 = vmatprep.subr.mxu0 0.0
    %144 = vmatpush1.msra.mxu0 %v54
    %145 = vmatprep.subr.mxu0 0.0
    %146 = vmatpush1.msra.mxu0 %v55
    %147 = vmatprep.subr.mxu0 0.0
    %148 = vmatpush1.msra.mxu0 0.0
    %149 = vmatprep.subr.mxu0 0.0
    %150 = vmatpush1.msra.mxu0 0.0
    %151 = vmatprep.subr.mxu0 0.0
    %152 = vmatpush1.msra.mxu0 0.0
    %153 = vmatprep.subr.mxu0 0.0
    %154 = vmatpush1.msra.mxu0 0.0
    %155 = vmatprep.subr.mxu0 0.0
    %156 = vmatpush1.msra.mxu0 0.0
    %157 = vmatprep.subr.mxu0 0.0
    %158 = vmatpush1.msra.mxu0 0.0
    %159 = vmatprep.subr.mxu0 0.0
    %160 = vmatpush1.msra.mxu0 0.0
    %161 = vmatprep.subr.mxu0 0.0
    %162 = vmatpush1.msra.mxu0 0.0
    %163 = vmatprep.subr.mxu0 0.0
    %164 = vmatpush1.msra.mxu0 0.0
    %165 = vmatprep.subr.mxu0 0.0
    %166 = vmatpush1.msra.mxu0 0.0
    %167 = vmatprep.subr.mxu0 0.0
    %168 = vmatpush1.msra.mxu0 0.0
    %169 = vmatprep.subr.mxu0 0.0
    %170 = vmatpush1.msra.mxu0 0.0
    %171 = vmatprep.subr.mxu0 0.0
    %172 = vmatpush1.msra.mxu0 0.0
    %173 = vmatprep.subr.mxu0 0.0
    %174 = vmatpush1.msra.mxu0 0.0
    %175 = vmatprep.subr.mxu0 0.0
    %176 = vmatpush1.msra.mxu0 0.0
    %177 = vmatprep.subr.mxu0 0.0
    %178 = vmatpush1.msra.mxu0 0.0
    %179 = vmatprep.subr.mxu0 0.0
    %180 = vmatpush1.msra.mxu0 0.0
    %181 = vmatprep.subr.mxu0 0.0
    %182 = vmatpush1.msra.mxu0 0.0
    %183 = vmatprep.subr.mxu0 0.0
    %184 = vmatpush1.msra.mxu0 0.0
    %185 = vmatprep.subr.mxu0 0.0
    %186 = vmatpush1.msra.mxu0 0.0
    %187 = vmatprep.subr.mxu0 0.0
    %188 = vmatpush1.msra.mxu0 0.0
    %189 = vmatprep.subr.mxu0 0.0
    %190 = vmatpush1.msra.mxu0 0.0
    %191 = vmatprep.subr.mxu0 0.0
    %192 = vmatpush1.msra.mxu0 0.0
    %193 = vmatprep.subr.mxu0 0.0
    %194 = vmatpush1.msra.mxu0 0.0
    %195 = vmatprep.subr.mxu0 0.0
    %196 = vmatpush1.msra.mxu0 0.0
    %197 = vmatprep.subr.mxu0 0.0
    %198 = vmatpush1.msra.mxu0 0.0
    %199 = vmatprep.subr.mxu0 0.0
    %200 = vmatpush1.msra.mxu0 0.0
    %201 = vmatprep.subr.mxu0 0.0
    %202 = vmatpush1.msra.mxu0 0.0
    %203 = vmatprep.mubr.f32.mxu0 0.0
    %204 = vmatmul.mubr.f32.gmra.mrb[0].mxu0 %v65
    %v205 = vpop.f32.mrb[0].mxu0
    %v206 = vadd.f32 %v61, %v205
    %v207 = vpop.f32.mrb[0].mxu0
    %208 = vmatprep.mubr.f32.mxu0 0.0
    %209 = vmatmul.mubr.f32.gmra.mrb[0].mxu0 %v68
    %v210 = vpop.f32.mrb[0].mxu0
    %v211 = vadd.f32 %v61, %v210
    %v212 = vpop.f32.mrb[0].mxu0
    %213 = vmatprep.mubr.f32.mxu0 0.0
    %214 = vmatmul.mubr.f32.gmra.mrb[0].mxu0 %v71
    %v215 = vpop.f32.mrb[0].mxu0
    %v216 = vadd.f32 %v61, %v215
    %v217 = vpop.f32.mrb[0].mxu0
    %218 = vmatprep.mubr.f32.mxu0 0.0
    %219 = vmatmul.mubr.f32.gmra.mrb[0].mxu0 %v74
    %v220 = vpop.f32.mrb[0].mxu0
    %v221 = vadd.f32 %v61, %v220
    %v222 = vpop.f32.mrb[0].mxu0
    %223 = vmatprep.mubr.f32.mxu0 0.0
    %224 = vmatmul.mubr.f32.gmra.mrb[0].mxu0 %v77
    %v225 = vpop.f32.mrb[0].mxu0
    %v226 = vadd.f32 %v61, %v225
    %v227 = vpop.f32.mrb[0].mxu0
    %228 = vmatprep.mubr.f32.mxu0 0.0
    %229 = vmatmul.mubr.f32.gmra.mrb[0].mxu0 %v80
    %v230 = vpop.f32.mrb[0].mxu0
    %v231 = vadd.f32 %v61, %v230
    %v232 = vpop.f32.mrb[0].mxu0
    %233 = vmatprep.mubr.f32.mxu0 0.0
    %234 = vmatmul.mubr.f32.gmra.mrb[0].mxu0 %v83
    %v235 = vpop.f32.mrb[0].mxu0
    %v236 = vadd.f32 %v61, %v235
    %v237 = vpop.f32.mrb[0].mxu0
    %238 = vmatprep.mubr.f32.mxu0 0.0
    %239 = vmatmul.mubr.f32.gmra.mrb[0].mxu0 %v86
    %v240 = vpop.f32.mrb[0].mxu0
    %v241 = vadd.f32 %v61, %v240
    %v242 = vpop.f32.mrb[0].mxu0
    %243 = vmatprep.mubr.f32.mxu0 0.0
    %244 = vmatmul.mubr.f32.gmra.mrb[0].mxu0 %v89
    %v245 = vpop.f32.mrb[0].mxu0
    %v246 = vadd.f32 %v61, %v245
    %v247 = vpop.f32.mrb[0].mxu0
    %248 = vmatprep.mubr.f32.mxu0 0.0
    %249 = vmatmul.mubr.f32.gmra.mrb[0].mxu0 %v92
    %v250 = vpop.f32.mrb[0].mxu0
    %v251 = vadd.f32 %v61, %v250
    %v252 = vpop.f32.mrb[0].mxu0
    %253 = vmatprep.mubr.f32.mxu0 0.0
    %254 = vmatmul.mubr.f32.gmra.mrb[0].mxu0 %v95
    %v255 = vpop.f32.mrb[0].mxu0
    %v256 = vadd.f32 %v61, %v255
    %v257 = vpop.f32.mrb[0].mxu0
    %258 = vmatprep.mubr.f32.mxu0 0.0
    %259 = vmatmul.mubr.f32.gmra.mrb[0].mxu0 %v98
    %v260 = vpop.f32.mrb[0].mxu0
    %v261 = vadd.f32 %v61, %v260
    %v262 = vpop.f32.mrb[0].mxu0
    %263 = vmatprep.mubr.f32.mxu0 0.0
    %264 = vmatmul.mubr.f32.gmra.mrb[0].mxu0 %v101
    %v265 = vpop.f32.mrb[0].mxu0
    %v266 = vadd.f32 %v61, %v265
    %v267 = vpop.f32.mrb[0].mxu0
    %268 = vmatprep.mubr.f32.mxu0 0.0
    %269 = vmatmul.mubr.f32.gmra.mrb[0].mxu0 %v104
    %v270 = vpop.f32.mrb[0].mxu0
    %v271 = vadd.f32 %v61, %v270
    %v272 = vpop.f32.mrb[0].mxu0
    %273 = vmatprep.mubr.f32.mxu0 0.0
    %274 = vmatmul.mubr.f32.gmra.mrb[0].mxu0 %v107
    %v275 = vpop.f32.mrb[0].mxu0
    %v276 = vadd.f32 %v61, %v275
    %v277 = vpop.f32.mrb[0].mxu0
    %278 = vmatprep.mubr.f32.mxu0 0.0
    %279 = vmatmul.mubr.f32.gmra.mrb[0].mxu0 %v110
    %v280 = vpop.f32.mrb[0].mxu0
    %v281 = vadd.f32 %v61, %v280
    %v282 = vpop.f32.mrb[0].mxu0
    %283 = vmatprep.mubr.f32.mxu0 0.0
    %284 = vmatmul.mubr.f32.gmra.mrb[0].mxu0 %v113
    %v285 = vpop.f32.mrb[0].mxu0
    %v286 = vadd.f32 %v61, %v285
    %v287 = vpop.f32.mrb[0].mxu0
    %288 = vmatprep.mubr.f32.mxu0 0.0
    %289 = vmatmul.mubr.f32.gmra.mrb[0].mxu0 %v116
    %v290 = vpop.f32.mrb[0].mxu0
    %v291 = vadd.f32 %v61, %v290
    %v292 = vpop.f32.mrb[0].mxu0
    %293 = vmatprep.mubr.f32.mxu0 0.0
    %294 = vmatmul.mubr.f32.gmra.mrb[0].mxu0 %v119
    %v295 = vpop.f32.mrb[0].mxu0
    %v296 = vadd.f32 %v61, %v295
    %v297 = vpop.f32.mrb[0].mxu0
    %298 = vmatprep.mubr.f32.mxu0 0.0
    %299 = vmatmul.mubr.f32.gmra.mrb[0].mxu0 %v122
    %v300 = vpop.f32.mrb[0].mxu0
    %v301 = vadd.f32 %v61, %v300
    %v302 = vpop.f32.mrb[0].mxu0
    %303 = vmatprep.mubr.f32.mxu0 0.0
    %304 = vmatmul.mubr.f32.gmra.mrb[0].mxu0 %v125
    %v305 = vpop.f32.mrb[0].mxu0
    %v306 = vadd.f32 %v61, %v305
    %v307 = vpop.f32.mrb[0].mxu0
    %308 = vmatprep.mubr.f32.mxu0 0.0
    %309 = vmatmul.mubr.f32.gmra.mrb[0].mxu0 %v128
    %v310 = vpop.f32.mrb[0].mxu0
    %v311 = vadd.f32 %v61, %v310
    %v312 = vpop.f32.mrb[0].mxu0
    %313 = vmatprep.mubr.f32.mxu0 0.0
    %314 = vmatmul.mubr.f32.gmra.mrb[0].mxu0 %v131
    %v315 = vpop.f32.mrb[0].mxu0
    %v316 = vadd.f32 %v61, %v315
    %v317 = vpop.f32.mrb[0].mxu0
    %318 = vmatprep.mubr.f32.mxu0 0.0
    %319 = vmatmul.mubr.f32.gmra.mrb[0].mxu0 %v134
    %v320 = vpop.f32.mrb[0].mxu0
    %v321 = vadd.f32 %v61, %v320
    %v322 = vpop.f32.mrb[0].mxu0
    %323 = vmatprep.mubr.f32.mxu0 0.0
    %324 = vmatmul.mubr.f32.gmra.mrb[0].mxu0 %v137
    %v325 = vpop.f32.mrb[0].mxu0
    %v326 = vadd.f32 %v61, %v325
    %v327 = vpop.f32.mrb[0].mxu0
    %328 = vdwg.mxu0
    %v329 = vtanh.pop %v206
    %v330 = vtanh.pop %v211
    %v331 = vtanh.pop %v216
    %v332 = vtanh.pop %v221
    %v333 = vtanh.pop %v226
    %v334 = vtanh.pop %v231
    %v335 = vtanh.pop %v236
    %v336 = vtanh.pop %v241
    %v337 = vtanh.pop %v246
    %v338 = vtanh.pop %v251
    %v339 = vtanh.pop %v256
    %v340 = vtanh.pop %v261
    %v341 = vtanh.pop %v266
    %v342 = vtanh.pop %v271
    %v343 = vtanh.pop %v276
    %v344 = vtanh.pop %v281
    %v345 = vtanh.pop %v286
    %v346 = vtanh.pop %v291
    %v347 = vtanh.pop %v296
    %v348 = vtanh.pop %v301
    %v349 = vtanh.pop %v306
    %v350 = vtanh.pop %v311
    %v351 = vtanh.pop %v316
    %v352 = vtanh.pop %v321
    %v353 = vtanh.pop %v326
    %v354 = vld [vmem:[%s3] sm:$0xff]
    %v355 = vld [vmem:[%s3 + $0x8] sm:$0xff]
    %v356 = vld [vmem:[%s3 + $0x10] sm:$0xff]
    %v357 = vld [vmem:[%s3 + $0x18] sm:$0xff]
    %v358 = vld [vmem:[%s3 + $0x20] sm:$0xff]
    %v359 = vld [vmem:[%s3 + $0x28] sm:$0xff]
    %v360 = vld [vmem:[%s3 + $0x30] sm:$0xff]
    %v361 = vld [vmem:[%s3 + $0x38] sm:$0xff]
    %v362 = vld [vmem:[%s4] sm:$0x1]
    %v364 = vlaneseq
    %v365 = vshrl.u32 %v364, 7
    %v366 = vsub.s32 0, %v365
    %v367 = vrot.slane %v362, %v366
    %vm369 = vcmask 523264
    %v371 = vsel %vm369, %v329, 0
    %v374 = vsel %vm369, %v330, 0
    %v377 = vsel %vm369, %v331, 0
    %v380 = vsel %vm369, %v332, 0
    %v383 = vsel %vm369, %v333, 0
    %v386 = vsel %vm369, %v334, 0
    %v389 = vsel %vm369, %v335, 0
    %v392 = vsel %vm369, %v336, 0
    %v395 = vsel %vm369, %v337, 0
    %v398 = vsel %vm369, %v338, 0
    %v401 = vsel %vm369, %v339, 0
    %v404 = vsel %vm369, %v340, 0
    %v407 = vsel %vm369, %v341, 0
    %v410 = vsel %vm369, %v342, 0
    %v413 = vsel %vm369, %v343, 0
    %v416 = vsel %vm369, %v344, 0
    %v419 = vsel %vm369, %v345, 0
    %v422 = vsel %vm369, %v346, 0
    %v425 = vsel %vm369, %v347, 0
    %v428 = vsel %vm369, %v348, 0
    %v431 = vsel %vm369, %v349, 0
    %v434 = vsel %vm369, %v350, 0
    %v437 = vsel %vm369, %v351, 0
    %v440 = vsel %vm369, %v352, 0
    %v443 = vsel %vm369, %v353, 0
    %445 = vmatprep.subr.mxu0 0.0
    %446 = vmatpush1.msra.mxu0 %v354
    %447 = vmatprep.subr.mxu0 0.0
    %448 = vmatpush1.msra.mxu0 %v355
    %449 = vmatprep.subr.mxu0 0.0
    %450 = vmatpush1.msra.mxu0 %v356
    %451 = vmatprep.subr.mxu0 0.0
    %452 = vmatpush1.msra.mxu0 %v357
    %453 = vmatprep.subr.mxu0 0.0
    %454 = vmatpush1.msra.mxu0 %v358
    %455 = vmatprep.subr.mxu0 0.0
    %456 = vmatpush1.msra.mxu0 %v359
    %457 = vmatprep.subr.mxu0 0.0
    %458 = vmatpush1.msra.mxu0 %v360
    %459 = vmatprep.subr.mxu0 0.0
    %460 = vmatpush1.msra.mxu0 %v361
    %461 = vmatprep.subr.mxu0 0.0
    %462 = vmatpush1.msra.mxu0 0.0
    %463 = vmatprep.subr.mxu0 0.0
    %464 = vmatpush1.msra.mxu0 0.0
    %465 = vmatprep.subr.mxu0 0.0
    %466 = vmatpush1.msra.mxu0 0.0
    %467 = vmatprep.subr.mxu0 0.0
    %468 = vmatpush1.msra.mxu0 0.0
    %469 = vmatprep.subr.mxu0 0.0
    %470 = vmatpush1.msra.mxu0 0.0
    %471 = vmatprep.subr.mxu0 0.0
    %472 = vmatpush1.msra.mxu0 0.0
    %473 = vmatprep.subr.mxu0 0.0
    %474 = vmatpush1.msra.mxu0 0.0
    %475 = vmatprep.subr.mxu0 0.0
    %476 = vmatpush1.msra.mxu0 0.0
    %477 = vmatprep.subr.mxu0 0.0
    %478 = vmatpush1.msra.mxu0 0.0
    %479 = vmatprep.subr.mxu0 0.0
    %480 = vmatpush1.msra.mxu0 0.0
    %481 = vmatprep.subr.mxu0 0.0
    %482 = vmatpush1.msra.mxu0 0.0
    %483 = vmatprep.subr.mxu0 0.0
    %484 = vmatpush1.msra.mxu0 0.0
    %485 = vmatprep.subr.mxu0 0.0
    %486 = vmatpush1.msra.mxu0 0.0
    %487 = vmatprep.subr.mxu0 0.0
    %488 = vmatpush1.msra.mxu0 0.0
    %489 = vmatprep.subr.mxu0 0.0
    %490 = vmatpush1.msra.mxu0 0.0
    %491 = vmatprep.subr.mxu0 0.0
    %492 = vmatpush1.msra.mxu0 0.0
    %493 = vmatprep.subr.mxu0 0.0
    %494 = vmatpush1.msra.mxu0 0.0
    %495 = vmatprep.subr.mxu0 0.0
    %496 = vmatpush1.msra.mxu0 0.0
    %497 = vmatprep.subr.mxu0 0.0
    %498 = vmatpush1.msra.mxu0 0.0
    %499 = vmatprep.subr.mxu0 0.0
    %500 = vmatpush1.msra.mxu0 0.0
    %501 = vmatprep.subr.mxu0 0.0
    %502 = vmatpush1.msra.mxu0 0.0
    %503 = vmatprep.subr.mxu0 0.0
    %504 = vmatpush1.msra.mxu0 0.0
    %505 = vmatprep.subr.mxu0 0.0
    %506 = vmatpush1.msra.mxu0 0.0
    %507 = vmatprep.subr.mxu0 0.0
    %508 = vmatpush1.msra.mxu0 0.0
    %509 = vmatprep.mubr.f32.mxu0 0.0
    %510 = vmatmul.mubr.f32.gmra.mrb[0].mxu0 %v371
    %v511 = vpop.f32.mrb[0].mxu0
    %v512 = vadd.f32 %v367, %v511
    %v513 = vpop.f32.mrb[0].mxu0
    %514 = vmatprep.mubr.f32.mxu0 0.0
    %515 = vmatmul.mubr.f32.gmra.mrb[0].mxu0 %v374
    %v516 = vpop.f32.mrb[0].mxu0
    %v517 = vadd.f32 %v367, %v516
    %v518 = vpop.f32.mrb[0].mxu0
    %519 = vmatprep.mubr.f32.mxu0 0.0
    %520 = vmatmul.mubr.f32.gmra.mrb[0].mxu0 %v377
    %v521 = vpop.f32.mrb[0].mxu0
    %v522 = vadd.f32 %v367, %v521
    %v523 = vpop.f32.mrb[0].mxu0
    %524 = vmatprep.mubr.f32.mxu0 0.0
    %525 = vmatmul.mubr.f32.gmra.mrb[0].mxu0 %v380
    %v526 = vpop.f32.mrb[0].mxu0
    %v527 = vadd.f32 %v367, %v526
    %v528 = vpop.f32.mrb[0].mxu0
    %529 = vmatprep.mubr.f32.mxu0 0.0
    %530 = vmatmul.mubr.f32.gmra.mrb[0].mxu0 %v383
    %v531 = vpop.f32.mrb[0].mxu0
    %v532 = vadd.f32 %v367, %v531
    %v533 = vpop.f32.mrb[0].mxu0
    %534 = vmatprep.mubr.f32.mxu0 0.0
    %535 = vmatmul.mubr.f32.gmra.mrb[0].mxu0 %v386
    %v536 = vpop.f32.mrb[0].mxu0
    %v537 = vadd.f32 %v367, %v536
    %v538 = vpop.f32.mrb[0].mxu0
    %539 = vmatprep.mubr.f32.mxu0 0.0
    %540 = vmatmul.mubr.f32.gmra.mrb[0].mxu0 %v389
    %v541 = vpop.f32.mrb[0].mxu0
    %v542 = vadd.f32 %v367, %v541
    %v543 = vpop.f32.mrb[0].mxu0
    %544 = vmatprep.mubr.f32.mxu0 0.0
    %545 = vmatmul.mubr.f32.gmra.mrb[0].mxu0 %v392
    %v546 = vpop.f32.mrb[0].mxu0
    %v547 = vadd.f32 %v367, %v546
    %v548 = vpop.f32.mrb[0].mxu0
    %549 = vmatprep.mubr.f32.mxu0 0.0
    %550 = vmatmul.mubr.f32.gmra.mrb[0].mxu0 %v395
    %v551 = vpop.f32.mrb[0].mxu0
    %v552 = vadd.f32 %v367, %v551
    %v553 = vpop.f32.mrb[0].mxu0
    %554 = vmatprep.mubr.f32.mxu0 0.0
    %555 = vmatmul.mubr.f32.gmra.mrb[0].mxu0 %v398
    %v556 = vpop.f32.mrb[0].mxu0
    %v557 = vadd.f32 %v367, %v556
    %v558 = vpop.f32.mrb[0].mxu0
    %559 = vmatprep.mubr.f32.mxu0 0.0
    %560 = vmatmul.mubr.f32.gmra.mrb[0].mxu0 %v401
    %v561 = vpop.f32.mrb[0].mxu0
    %v562 = vadd.f32 %v367, %v561
    %v563 = vpop.f32.mrb[0].mxu0
    %564 = vmatprep.mubr.f32.mxu0 0.0
    %565 = vmatmul.mubr.f32.gmra.mrb[0].mxu0 %v404
    %v566 = vpop.f32.mrb[0].mxu0
    %v567 = vadd.f32 %v367, %v566
    %v568 = vpop.f32.mrb[0].mxu0
    %569 = vmatprep.mubr.f32.mxu0 0.0
    %570 = vmatmul.mubr.f32.gmra.mrb[0].mxu0 %v407
    %v571 = vpop.f32.mrb[0].mxu0
    %v572 = vadd.f32 %v367, %v571
    %v573 = vpop.f32.mrb[0].mxu0
    %574 = vmatprep.mubr.f32.mxu0 0.0
    %575 = vmatmul.mubr.f32.gmra.mrb[0].mxu0 %v410
    %v576 = vpop.f32.mrb[0].mxu0
    %v577 = vadd.f32 %v367, %v576
    %v578 = vpop.f32.mrb[0].mxu0
    %579 = vmatprep.mubr.f32.mxu0 0.0
    %580 = vmatmul.mubr.f32.gmra.mrb[0].mxu0 %v413
    %v581 = vpop.f32.mrb[0].mxu0
    %v582 = vadd.f32 %v367, %v581
    %v583 = vpop.f32.mrb[0].mxu0
    %584 = vmatprep.mubr.f32.mxu0 0.0
    %585 = vmatmul.mubr.f32.gmra.mrb[0].mxu0 %v416
    %v586 = vpop.f32.mrb[0].mxu0
    %v587 = vadd.f32 %v367, %v586
    %v588 = vpop.f32.mrb[0].mxu0
    %589 = vmatprep.mubr.f32.mxu0 0.0
    %590 = vmatmul.mubr.f32.gmra.mrb[0].mxu0 %v419
    %v591 = vpop.f32.mrb[0].mxu0
    %v592 = vadd.f32 %v367, %v591
    %v593 = vpop.f32.mrb[0].mxu0
    %594 = vmatprep.mubr.f32.mxu0 0.0
    %595 = vmatmul.mubr.f32.gmra.mrb[0].mxu0 %v422
    %v596 = vpop.f32.mrb[0].mxu0
    %v597 = vadd.f32 %v367, %v596
    %v598 = vpop.f32.mrb[0].mxu0
    %599 = vmatprep.mubr.f32.mxu0 0.0
    %600 = vmatmul.mubr.f32.gmra.mrb[0].mxu0 %v425
    %v601 = vpop.f32.mrb[0].mxu0
    %v602 = vadd.f32 %v367, %v601
    %v603 = vpop.f32.mrb[0].mxu0
    %604 = vmatprep.mubr.f32.mxu0 0.0
    %605 = vmatmul.mubr.f32.gmra.mrb[0].mxu0 %v428
    %v606 = vpop.f32.mrb[0].mxu0
    %v607 = vadd.f32 %v367, %v606
    %v608 = vpop.f32.mrb[0].mxu0
    %609 = vmatprep.mubr.f32.mxu0 0.0
    %610 = vmatmul.mubr.f32.gmra.mrb[0].mxu0 %v431
    %v611 = vpop.f32.mrb[0].mxu0
    %v612 = vadd.f32 %v367, %v611
    %v613 = vpop.f32.mrb[0].mxu0
    %614 = vmatprep.mubr.f32.mxu0 0.0
    %615 = vmatmul.mubr.f32.gmra.mrb[0].mxu0 %v434
    %v616 = vpop.f32.mrb[0].mxu0
    %v617 = vadd.f32 %v367, %v616
    %v618 = vpop.f32.mrb[0].mxu0
    %619 = vmatprep.mubr.f32.mxu0 0.0
    %620 = vmatmul.mubr.f32.gmra.mrb[0].mxu0 %v437
    %v621 = vpop.f32.mrb[0].mxu0
    %v622 = vadd.f32 %v367, %v621
    %v623 = vpop.f32.mrb[0].mxu0
    %624 = vmatprep.mubr.f32.mxu0 0.0
    %625 = vmatmul.mubr.f32.gmra.mrb[0].mxu0 %v440
    %v626 = vpop.f32.mrb[0].mxu0
    %v627 = vadd.f32 %v367, %v626
    %v628 = vpop.f32.mrb[0].mxu0
    %629 = vmatprep.mubr.f32.mxu0 0.0
    %630 = vmatmul.mubr.f32.gmra.mrb[0].mxu0 %v443
    %v631 = vpop.f32.mrb[0].mxu0
    %v632 = vadd.f32 %v367, %v631
    %v633 = vpop.f32.mrb[0].mxu0
    %634 = vdwg.mxu0
    %v635 = vtanh.pop %v512
    %v636 = vtanh.pop %v517
    %v637 = vtanh.pop %v522
    %v638 = vtanh.pop %v527
    %v639 = vtanh.pop %v532
    %v640 = vtanh.pop %v537
    %v641 = vtanh.pop %v542
    %v642 = vtanh.pop %v547
    %v643 = vtanh.pop %v552
    %v644 = vtanh.pop %v557
    %v645 = vtanh.pop %v562
    %v646 = vtanh.pop %v567
    %v647 = vtanh.pop %v572
    %v648 = vtanh.pop %v577
    %v649 = vtanh.pop %v582
    %v650 = vtanh.pop %v587
    %v651 = vtanh.pop %v592
    %v652 = vtanh.pop %v597
    %v653 = vtanh.pop %v602
    %v654 = vtanh.pop %v607
    %v655 = vtanh.pop %v612
    %v656 = vtanh.pop %v617
    %v657 = vtanh.pop %v622
    %v658 = vtanh.pop %v627
    %v659 = vtanh.pop %v632
    %v660 = vld [vmem:[%s5] sm:$0xff]
    %v661 = vld [vmem:[%s5 + $0x8] sm:$0xff]
    %v662 = vld [vmem:[%s5 + $0x10] sm:$0xff]
    %v663 = vld [vmem:[%s5 + $0x18] sm:$0xff]
    %v664 = vld [vmem:[%s5 + $0x20] sm:$0xff]
    %v665 = vld [vmem:[%s5 + $0x28] sm:$0xff]
    %v666 = vld [vmem:[%s5 + $0x30] sm:$0xff]
    %v667 = vld [vmem:[%s5 + $0x38] sm:$0xff]
    %v668 = vld [vmem:[%s6] sm:$0x1]
    %v670 = vlaneseq
    %v671 = vshrl.u32 %v670, 7
    %v672 = vsub.s32 0, %v671
    %v673 = vrot.slane %v668, %v672
    %v676 = vsel %vm369, %v635, 0
    %v679 = vsel %vm369, %v636, 0
    %v682 = vsel %vm369, %v637, 0
    %v685 = vsel %vm369, %v638, 0
    %v688 = vsel %vm369, %v639, 0
    %v691 = vsel %vm369, %v640, 0
    %v694 = vsel %vm369, %v641, 0
    %v697 = vsel %vm369, %v642, 0
    %v700 = vsel %vm369, %v643, 0
    %v703 = vsel %vm369, %v644, 0
    %v706 = vsel %vm369, %v645, 0
    %v709 = vsel %vm369, %v646, 0
    %v712 = vsel %vm369, %v647, 0
    %v715 = vsel %vm369, %v648, 0
    %v718 = vsel %vm369, %v649, 0
    %v721 = vsel %vm369, %v650, 0
    %v724 = vsel %vm369, %v651, 0
    %v727 = vsel %vm369, %v652, 0
    %v730 = vsel %vm369, %v653, 0
    %v733 = vsel %vm369, %v654, 0
    %v736 = vsel %vm369, %v655, 0
    %v739 = vsel %vm369, %v656, 0
    %v742 = vsel %vm369, %v657, 0
    %v745 = vsel %vm369, %v658, 0
    %v748 = vsel %vm369, %v659, 0
    %750 = vmatprep.subr.mxu0 0.0
    %751 = vmatpush1.msra.mxu0 %v660
    %752 = vmatprep.subr.mxu0 0.0
    %753 = vmatpush1.msra.mxu0 %v661
    %754 = vmatprep.subr.mxu0 0.0
    %755 = vmatpush1.msra.mxu0 %v662
    %756 = vmatprep.subr.mxu0 0.0
    %757 = vmatpush1.msra.mxu0 %v663
    %758 = vmatprep.subr.mxu0 0.0
    %759 = vmatpush1.msra.mxu0 %v664
    %760 = vmatprep.subr.mxu0 0.0
    %761 = vmatpush1.msra.mxu0 %v665
    %762 = vmatprep.subr.mxu0 0.0
    %763 = vmatpush1.msra.mxu0 %v666
    %764 = vmatprep.subr.mxu0 0.0
    %765 = vmatpush1.msra.mxu0 %v667
    %766 = vmatprep.subr.mxu0 0.0
    %767 = vmatpush1.msra.mxu0 0.0
    %768 = vmatprep.subr.mxu0 0.0
    %769 = vmatpush1.msra.mxu0 0.0
    %770 = vmatprep.subr.mxu0 0.0
    %771 = vmatpush1.msra.mxu0 0.0
    %772 = vmatprep.subr.mxu0 0.0
    %773 = vmatpush1.msra.mxu0 0.0
    %774 = vmatprep.subr.mxu0 0.0
    %775 = vmatpush1.msra.mxu0 0.0
    %776 = vmatprep.subr.mxu0 0.0
    %777 = vmatpush1.msra.mxu0 0.0
    %778 = vmatprep.subr.mxu0 0.0
    %779 = vmatpush1.msra.mxu0 0.0
    %780 = vmatprep.subr.mxu0 0.0
    %781 = vmatpush1.msra.mxu0 0.0
    %782 = vmatprep.subr.mxu0 0.0
    %783 = vmatpush1.msra.mxu0 0.0
    %784 = vmatprep.subr.mxu0 0.0
    %785 = vmatpush1.msra.mxu0 0.0
    %786 = vmatprep.subr.mxu0 0.0
    %787 = vmatpush1.msra.mxu0 0.0
    %788 = vmatprep.subr.mxu0 0.0
    %789 = vmatpush1.msra.mxu0 0.0
    %790 = vmatprep.subr.mxu0 0.0
    %791 = vmatpush1.msra.mxu0 0.0
    %792 = vmatprep.subr.mxu0 0.0
    %793 = vmatpush1.msra.mxu0 0.0
    %794 = vmatprep.subr.mxu0 0.0
    %795 = vmatpush1.msra.mxu0 0.0
    %796 = vmatprep.subr.mxu0 0.0
    %797 = vmatpush1.msra.mxu0 0.0
    %798 = vmatprep.subr.mxu0 0.0
    %799 = vmatpush1.msra.mxu0 0.0
    %800 = vmatprep.subr.mxu0 0.0
    %801 = vmatpush1.msra.mxu0 0.0
    %802 = vmatprep.subr.mxu0 0.0
    %803 = vmatpush1.msra.mxu0 0.0
    %804 = vmatprep.subr.mxu0 0.0
    %805 = vmatpush1.msra.mxu0 0.0
    %806 = vmatprep.subr.mxu0 0.0
    %807 = vmatpush1.msra.mxu0 0.0
    %808 = vmatprep.subr.mxu0 0.0
    %809 = vmatpush1.msra.mxu0 0.0
    %810 = vmatprep.subr.mxu0 0.0
    %811 = vmatpush1.msra.mxu0 0.0
    %812 = vmatprep.subr.mxu0 0.0
    %813 = vmatpush1.msra.mxu0 0.0
    %814 = vmatprep.mubr.f32.mxu0 0.0
    %815 = vmatmul.mubr.f32.gmra.mrb[0].mxu0 %v676
    %v816 = vpop.f32.mrb[0].mxu0
    %v817 = vadd.f32 %v673, %v816
    %v818 = vpop.f32.mrb[0].mxu0
    %819 = vmatprep.mubr.f32.mxu0 0.0
    %820 = vmatmul.mubr.f32.gmra.mrb[0].mxu0 %v679
    %v821 = vpop.f32.mrb[0].mxu0
    %v822 = vadd.f32 %v673, %v821
    %v823 = vpop.f32.mrb[0].mxu0
    %824 = vmatprep.mubr.f32.mxu0 0.0
    %825 = vmatmul.mubr.f32.gmra.mrb[0].mxu0 %v682
    %v826 = vpop.f32.mrb[0].mxu0
    %v827 = vadd.f32 %v673, %v826
    %v828 = vpop.f32.mrb[0].mxu0
    %829 = vmatprep.mubr.f32.mxu0 0.0
    %830 = vmatmul.mubr.f32.gmra.mrb[0].mxu0 %v685
    %v831 = vpop.f32.mrb[0].mxu0
    %v832 = vadd.f32 %v673, %v831
    %v833 = vpop.f32.mrb[0].mxu0
    %834 = vmatprep.mubr.f32.mxu0 0.0
    %835 = vmatmul.mubr.f32.gmra.mrb[0].mxu0 %v688
    %v836 = vpop.f32.mrb[0].mxu0
    %v837 = vadd.f32 %v673, %v836
    %v838 = vpop.f32.mrb[0].mxu0
    %839 = vmatprep.mubr.f32.mxu0 0.0
    %840 = vmatmul.mubr.f32.gmra.mrb[0].mxu0 %v691
    %v841 = vpop.f32.mrb[0].mxu0
    %v842 = vadd.f32 %v673, %v841
    %v843 = vpop.f32.mrb[0].mxu0
    %844 = vmatprep.mubr.f32.mxu0 0.0
    %845 = vmatmul.mubr.f32.gmra.mrb[0].mxu0 %v694
    %v846 = vpop.f32.mrb[0].mxu0
    %v847 = vadd.f32 %v673, %v846
    %v848 = vpop.f32.mrb[0].mxu0
    %849 = vmatprep.mubr.f32.mxu0 0.0
    %850 = vmatmul.mubr.f32.gmra.mrb[0].mxu0 %v697
    %v851 = vpop.f32.mrb[0].mxu0
    %v852 = vadd.f32 %v673, %v851
    %v853 = vpop.f32.mrb[0].mxu0
    %854 = vmatprep.mubr.f32.mxu0 0.0
    %855 = vmatmul.mubr.f32.gmra.mrb[0].mxu0 %v700
    %v856 = vpop.f32.mrb[0].mxu0
    %v857 = vadd.f32 %v673, %v856
    %v858 = vpop.f32.mrb[0].mxu0
    %859 = vmatprep.mubr.f32.mxu0 0.0
    %860 = vmatmul.mubr.f32.gmra.mrb[0].mxu0 %v703
    %v861 = vpop.f32.mrb[0].mxu0
    %v862 = vadd.f32 %v673, %v861
    %v863 = vpop.f32.mrb[0].mxu0
    %864 = vmatprep.mubr.f32.mxu0 0.0
    %865 = vmatmul.mubr.f32.gmra.mrb[0].mxu0 %v706
    %v866 = vpop.f32.mrb[0].mxu0
    %v867 = vadd.f32 %v673, %v866
    %v868 = vpop.f32.mrb[0].mxu0
    %869 = vmatprep.mubr.f32.mxu0 0.0
    %870 = vmatmul.mubr.f32.gmra.mrb[0].mxu0 %v709
    %v871 = vpop.f32.mrb[0].mxu0
    %v872 = vadd.f32 %v673, %v871
    %v873 = vpop.f32.mrb[0].mxu0
    %874 = vmatprep.mubr.f32.mxu0 0.0
    %875 = vmatmul.mubr.f32.gmra.mrb[0].mxu0 %v712
    %v876 = vpop.f32.mrb[0].mxu0
    %v877 = vadd.f32 %v673, %v876
    %v878 = vpop.f32.mrb[0].mxu0
    %879 = vmatprep.mubr.f32.mxu0 0.0
    %880 = vmatmul.mubr.f32.gmra.mrb[0].mxu0 %v715
    %v881 = vpop.f32.mrb[0].mxu0
    %v882 = vadd.f32 %v673, %v881
    %v883 = vpop.f32.mrb[0].mxu0
    %884 = vmatprep.mubr.f32.mxu0 0.0
    %885 = vmatmul.mubr.f32.gmra.mrb[0].mxu0 %v718
    %v886 = vpop.f32.mrb[0].mxu0
    %v887 = vadd.f32 %v673, %v886
    %v888 = vpop.f32.mrb[0].mxu0
    %889 = vmatprep.mubr.f32.mxu0 0.0
    %890 = vmatmul.mubr.f32.gmra.mrb[0].mxu0 %v721
    %v891 = vpop.f32.mrb[0].mxu0
    %v892 = vadd.f32 %v673, %v891
    %v893 = vpop.f32.mrb[0].mxu0
    %894 = vmatprep.mubr.f32.mxu0 0.0
    %895 = vmatmul.mubr.f32.gmra.mrb[0].mxu0 %v724
    %v896 = vpop.f32.mrb[0].mxu0
    %v897 = vadd.f32 %v673, %v896
    %v898 = vpop.f32.mrb[0].mxu0
    %899 = vmatprep.mubr.f32.mxu0 0.0
    %900 = vmatmul.mubr.f32.gmra.mrb[0].mxu0 %v727
    %v901 = vpop.f32.mrb[0].mxu0
    %v902 = vadd.f32 %v673, %v901
    %v903 = vpop.f32.mrb[0].mxu0
    %904 = vmatprep.mubr.f32.mxu0 0.0
    %905 = vmatmul.mubr.f32.gmra.mrb[0].mxu0 %v730
    %v906 = vpop.f32.mrb[0].mxu0
    %v907 = vadd.f32 %v673, %v906
    %v908 = vpop.f32.mrb[0].mxu0
    %909 = vmatprep.mubr.f32.mxu0 0.0
    %910 = vmatmul.mubr.f32.gmra.mrb[0].mxu0 %v733
    %v911 = vpop.f32.mrb[0].mxu0
    %v912 = vadd.f32 %v673, %v911
    %v913 = vpop.f32.mrb[0].mxu0
    %914 = vmatprep.mubr.f32.mxu0 0.0
    %915 = vmatmul.mubr.f32.gmra.mrb[0].mxu0 %v736
    %v916 = vpop.f32.mrb[0].mxu0
    %v917 = vadd.f32 %v673, %v916
    %v918 = vpop.f32.mrb[0].mxu0
    %919 = vmatprep.mubr.f32.mxu0 0.0
    %920 = vmatmul.mubr.f32.gmra.mrb[0].mxu0 %v739
    %v921 = vpop.f32.mrb[0].mxu0
    %v922 = vadd.f32 %v673, %v921
    %v923 = vpop.f32.mrb[0].mxu0
    %924 = vmatprep.mubr.f32.mxu0 0.0
    %925 = vmatmul.mubr.f32.gmra.mrb[0].mxu0 %v742
    %v926 = vpop.f32.mrb[0].mxu0
    %v927 = vadd.f32 %v673, %v926
    %v928 = vpop.f32.mrb[0].mxu0
    %929 = vmatprep.mubr.f32.mxu0 0.0
    %930 = vmatmul.mubr.f32.gmra.mrb[0].mxu0 %v745
    %v931 = vpop.f32.mrb[0].mxu0
    %v932 = vadd.f32 %v673, %v931
    %v933 = vpop.f32.mrb[0].mxu0
    %934 = vmatprep.mubr.f32.mxu0 0.0
    %935 = vmatmul.mubr.f32.gmra.mrb[0].mxu0 %v748
    %v936 = vpop.f32.mrb[0].mxu0
    %v937 = vadd.f32 %v673, %v936
    %v938 = vpop.f32.mrb[0].mxu0
    %939 = vdwg.mxu0
    %940 = vmax.xlane.f32.xlu0 %v817
    %v941 = vpop.xlane.xlu0 %940
    %942 = vmax.xlane.f32.xlu0 %v822
    %v943 = vpop.xlane.xlu0 %942
    %944 = vmax.xlane.f32.xlu0 %v827
    %v945 = vpop.xlane.xlu0 %944
    %946 = vmax.xlane.f32.xlu0 %v832
    %v947 = vpop.xlane.xlu0 %946
    %948 = vmax.xlane.f32.xlu0 %v837
    %v949 = vpop.xlane.xlu0 %948
    %950 = vmax.xlane.f32.xlu0 %v842
    %v951 = vpop.xlane.xlu0 %950
    %952 = vmax.xlane.f32.xlu0 %v847
    %v953 = vpop.xlane.xlu0 %952
    %954 = vmax.xlane.f32.xlu0 %v852
    %v955 = vpop.xlane.xlu0 %954
    %956 = vmax.xlane.f32.xlu0 %v857
    %v957 = vpop.xlane.xlu0 %956
    %958 = vmax.xlane.f32.xlu0 %v862
    %v959 = vpop.xlane.xlu0 %958
    %960 = vmax.xlane.f32.xlu0 %v867
    %v961 = vpop.xlane.xlu0 %960
    %962 = vmax.xlane.f32.xlu0 %v872
    %v963 = vpop.xlane.xlu0 %962
    %964 = vmax.xlane.f32.xlu0 %v877
    %v965 = vpop.xlane.xlu0 %964
    %966 = vmax.xlane.f32.xlu0 %v882
    %v967 = vpop.xlane.xlu0 %966
    %968 = vmax.xlane.f32.xlu0 %v887
    %v969 = vpop.xlane.xlu0 %968
    %970 = vmax.xlane.f32.xlu0 %v892
    %v971 = vpop.xlane.xlu0 %970
    %972 = vmax.xlane.f32.xlu0 %v897
    %v973 = vpop.xlane.xlu0 %972
    %974 = vmax.xlane.f32.xlu0 %v902
    %v975 = vpop.xlane.xlu0 %974
    %976 = vmax.xlane.f32.xlu0 %v907
    %v977 = vpop.xlane.xlu0 %976
    %978 = vmax.xlane.f32.xlu0 %v912
    %v979 = vpop.xlane.xlu0 %978
    %980 = vmax.xlane.f32.xlu0 %v917
    %v981 = vpop.xlane.xlu0 %980
    %982 = vmax.xlane.f32.xlu0 %v922
    %v983 = vpop.xlane.xlu0 %982
    %984 = vmax.xlane.f32.xlu0 %v927
    %v985 = vpop.xlane.xlu0 %984
    %986 = vmax.xlane.f32.xlu0 %v932
    %v987 = vpop.xlane.xlu0 %986
    %988 = vmax.xlane.f32.xlu0 %v937
    %v989 = vpop.xlane.xlu0 %988
    %v990 = vsub.f32 %v817, %v941
    %v991 = vsub.f32 %v822, %v943
    %v992 = vsub.f32 %v827, %v945
    %v993 = vsub.f32 %v832, %v947
    %v994 = vsub.f32 %v837, %v949
    %v995 = vsub.f32 %v842, %v951
    %v996 = vsub.f32 %v847, %v953
    %v997 = vsub.f32 %v852, %v955
    %v998 = vsub.f32 %v857, %v957
    %v999 = vsub.f32 %v862, %v959
    %v1000 = vsub.f32 %v867, %v961
    %v1001 = vsub.f32 %v872, %v963
    %v1002 = vsub.f32 %v877, %v965
    %v1003 = vsub.f32 %v882, %v967
    %v1004 = vsub.f32 %v887, %v969
    %v1005 = vsub.f32 %v892, %v971
    %v1006 = vsub.f32 %v897, %v973
    %v1007 = vsub.f32 %v902, %v975
    %v1008 = vsub.f32 %v907, %v977
    %v1009 = vsub.f32 %v912, %v979
    %v1010 = vsub.f32 %v917, %v981
    %v1011 = vsub.f32 %v922, %v983
    %v1012 = vsub.f32 %v927, %v985
    %v1013 = vsub.f32 %v932, %v987
    %v1014 = vsub.f32 %v937, %v989
    %v1015 = vmul.f32 %v990, 1.442695
    %v1016 = vpow.pop %v1015
    %v1017 = vmul.f32 %v991, 1.442695
    %v1018 = vpow.pop %v1017
    %v1019 = vmul.f32 %v992, 1.442695
    %v1020 = vpow.pop %v1019
    %v1021 = vmul.f32 %v993, 1.442695
    %v1022 = vpow.pop %v1021
    %v1023 = vmul.f32 %v994, 1.442695
    %v1024 = vpow.pop %v1023
    %v1025 = vmul.f32 %v995, 1.442695
    %v1026 = vpow.pop %v1025
    %v1027 = vmul.f32 %v996, 1.442695
    %v1028 = vpow.pop %v1027
    %v1029 = vmul.f32 %v997, 1.442695
    %v1030 = vpow.pop %v1029
    %v1031 = vmul.f32 %v998, 1.442695
    %v1032 = vpow.pop %v1031
    %v1033 = vmul.f32 %v999, 1.442695
    %v1034 = vpow.pop %v1033
    %v1035 = vmul.f32 %v1000, 1.442695
    %v1036 = vpow.pop %v1035
    %v1037 = vmul.f32 %v1001, 1.442695
    %v1038 = vpow.pop %v1037
    %v1039 = vmul.f32 %v1002, 1.442695
    %v1040 = vpow.pop %v1039
    %v1041 = vmul.f32 %v1003, 1.442695
    %v1042 = vpow.pop %v1041
    %v1043 = vmul.f32 %v1004, 1.442695
    %v1044 = vpow.pop %v1043
    %v1045 = vmul.f32 %v1005, 1.442695
    %v1046 = vpow.pop %v1045
    %v1047 = vmul.f32 %v1006, 1.442695
    %v1048 = vpow.pop %v1047
    %v1049 = vmul.f32 %v1007, 1.442695
    %v1050 = vpow.pop %v1049
    %v1051 = vmul.f32 %v1008, 1.442695
    %v1052 = vpow.pop %v1051
    %v1053 = vmul.f32 %v1009, 1.442695
    %v1054 = vpow.pop %v1053
    %v1055 = vmul.f32 %v1010, 1.442695
    %v1056 = vpow.pop %v1055
    %v1057 = vmul.f32 %v1011, 1.442695
    %v1058 = vpow.pop %v1057
    %v1059 = vmul.f32 %v1012, 1.442695
    %v1060 = vpow.pop %v1059
    %v1061 = vmul.f32 %v1013, 1.442695
    %v1062 = vpow.pop %v1061
    %v1063 = vmul.f32 %v1014, 1.442695
    %v1064 = vpow.pop %v1063
    %1065 = vadd.xlane.f32.xlu0 %v1016
    %v1066 = vpop.xlane.xlu0 %1065
    %1067 = vadd.xlane.f32.xlu0 %v1018
    %v1068 = vpop.xlane.xlu0 %1067
    %1069 = vadd.xlane.f32.xlu0 %v1020
    %v1070 = vpop.xlane.xlu0 %1069
    %1071 = vadd.xlane.f32.xlu0 %v1022
    %v1072 = vpop.xlane.xlu0 %1071
    %1073 = vadd.xlane.f32.xlu0 %v1024
    %v1074 = vpop.xlane.xlu0 %1073
    %1075 = vadd.xlane.f32.xlu0 %v1026
    %v1076 = vpop.xlane.xlu0 %1075
    %1077 = vadd.xlane.f32.xlu0 %v1028
    %v1078 = vpop.xlane.xlu0 %1077
    %1079 = vadd.xlane.f32.xlu0 %v1030
    %v1080 = vpop.xlane.xlu0 %1079
    %1081 = vadd.xlane.f32.xlu0 %v1032
    %v1082 = vpop.xlane.xlu0 %1081
    %1083 = vadd.xlane.f32.xlu0 %v1034
    %v1084 = vpop.xlane.xlu0 %1083
    %1085 = vadd.xlane.f32.xlu0 %v1036
    %v1086 = vpop.xlane.xlu0 %1085
    %1087 = vadd.xlane.f32.xlu0 %v1038
    %v1088 = vpop.xlane.xlu0 %1087
    %1089 = vadd.xlane.f32.xlu0 %v1040
    %v1090 = vpop.xlane.xlu0 %1089
    %1091 = vadd.xlane.f32.xlu0 %v1042
    %v1092 = vpop.xlane.xlu0 %1091
    %1093 = vadd.xlane.f32.xlu0 %v1044
    %v1094 = vpop.xlane.xlu0 %1093
    %1095 = vadd.xlane.f32.xlu0 %v1046
    %v1096 = vpop.xlane.xlu0 %1095
    %1097 = vadd.xlane.f32.xlu0 %v1048
    %v1098 = vpop.xlane.xlu0 %1097
    %1099 = vadd.xlane.f32.xlu0 %v1050
    %v1100 = vpop.xlane.xlu0 %1099
    %1101 = vadd.xlane.f32.xlu0 %v1052
    %v1102 = vpop.xlane.xlu0 %1101
    %1103 = vadd.xlane.f32.xlu0 %v1054
    %v1104 = vpop.xlane.xlu0 %1103
    %1105 = vadd.xlane.f32.xlu0 %v1056
    %v1106 = vpop.xlane.xlu0 %1105
    %1107 = vadd.xlane.f32.xlu0 %v1058
    %v1108 = vpop.xlane.xlu0 %1107
    %1109 = vadd.xlane.f32.xlu0 %v1060
    %v1110 = vpop.xlane.xlu0 %1109
    %1111 = vadd.xlane.f32.xlu0 %v1062
    %v1112 = vpop.xlane.xlu0 %1111
    %1113 = vadd.xlane.f32.xlu0 %v1064
    %v1114 = vpop.xlane.xlu0 %1113
    %v1115 = vrcp.pop %v1066
    %v1116 = vmul.f32 %v1016, %v1115
    %v1117 = vrcp.pop %v1068
    %v1118 = vmul.f32 %v1018, %v1117
    %v1119 = vrcp.pop %v1070
    %v1120 = vmul.f32 %v1020, %v1119
    %v1121 = vrcp.pop %v1072
    %v1122 = vmul.f32 %v1022, %v1121
    %v1123 = vrcp.pop %v1074
    %v1124 = vmul.f32 %v1024, %v1123
    %v1125 = vrcp.pop %v1076
    %v1126 = vmul.f32 %v1026, %v1125
    %v1127 = vrcp.pop %v1078
    %v1128 = vmul.f32 %v1028, %v1127
    %v1129 = vrcp.pop %v1080
    %v1130 = vmul.f32 %v1030, %v1129
    %v1131 = vrcp.pop %v1082
    %v1132 = vmul.f32 %v1032, %v1131
    %v1133 = vrcp.pop %v1084
    %v1134 = vmul.f32 %v1034, %v1133
    %v1135 = vrcp.pop %v1086
    %v1136 = vmul.f32 %v1036, %v1135
    %v1137 = vrcp.pop %v1088
    %v1138 = vmul.f32 %v1038, %v1137
    %v1139 = vrcp.pop %v1090
    %v1140 = vmul.f32 %v1040, %v1139
    %v1141 = vrcp.pop %v1092
    %v1142 = vmul.f32 %v1042, %v1141
    %v1143 = vrcp.pop %v1094
    %v1144 = vmul.f32 %v1044, %v1143
    %v1145 = vrcp.pop %v1096
    %v1146 = vmul.f32 %v1046, %v1145
    %v1147 = vrcp.pop %v1098
    %v1148 = vmul.f32 %v1048, %v1147
    %v1149 = vrcp.pop %v1100
    %v1150 = vmul.f32 %v1050, %v1149
    %v1151 = vrcp.pop %v1102
    %v1152 = vmul.f32 %v1052, %v1151
    %v1153 = vrcp.pop %v1104
    %v1154 = vmul.f32 %v1054, %v1153
    %v1155 = vrcp.pop %v1106
    %v1156 = vmul.f32 %v1056, %v1155
    %v1157 = vrcp.pop %v1108
    %v1158 = vmul.f32 %v1058, %v1157
    %v1159 = vrcp.pop %v1110
    %v1160 = vmul.f32 %v1060, %v1159
    %v1161 = vrcp.pop %v1112
    %v1162 = vmul.f32 %v1062, %v1161
    %v1163 = vrcp.pop %v1114
    %v1164 = vmul.f32 %v1064, %v1163
    %1165 = vst [vmem:[#allocation2] sm:$0xff] %v1116
    %1166 = vst [vmem:[#allocation2 + $0x8] sm:$0xff] %v1118
    %1167 = vst [vmem:[#allocation2 + $0x10] sm:$0xff] %v1120
    %1168 = vst [vmem:[#allocation2 + $0x18] sm:$0xff] %v1122
    %1169 = vst [vmem:[#allocation2 + $0x20] sm:$0xff] %v1124
    %1170 = vst [vmem:[#allocation2 + $0x28] sm:$0xff] %v1126
    %1171 = vst [vmem:[#allocation2 + $0x30] sm:$0xff] %v1128
    %1172 = vst [vmem:[#allocation2 + $0x38] sm:$0xff] %v1130
    %1173 = vst [vmem:[#allocation2 + $0x40] sm:$0xff] %v1132
    %1174 = vst [vmem:[#allocation2 + $0x48] sm:$0xff] %v1134
    %1175 = vst [vmem:[#allocation2 + $0x50] sm:$0xff] %v1136
    %1176 = vst [vmem:[#allocation2 + $0x58] sm:$0xff] %v1138
    %1177 = vst [vmem:[#allocation2 + $0x60] sm:$0xff] %v1140
    %1178 = vst [vmem:[#allocation2 + $0x68] sm:$0xff] %v1142
    %1179 = vst [vmem:[#allocation2 + $0x70] sm:$0xff] %v1144
    %1180 = vst [vmem:[#allocation2 + $0x78] sm:$0xff] %v1146
    %1181 = vst [vmem:[#allocation2 + $0x80] sm:$0xff] %v1148
    %1182 = vst [vmem:[#allocation2 + $0x88] sm:$0xff] %v1150
    %1183 = vst [vmem:[#allocation2 + $0x90] sm:$0xff] %v1152
    %1184 = vst [vmem:[#allocation2 + $0x98] sm:$0xff] %v1154
    %1185 = vst [vmem:[#allocation2 + $0xa0] sm:$0xff] %v1156
    %1186 = vst [vmem:[#allocation2 + $0xa8] sm:$0xff] %v1158
    %1187 = vst [vmem:[#allocation2 + $0xb0] sm:$0xff] %v1160
    %1188 = vst [vmem:[#allocation2 + $0xb8] sm:$0xff] %v1162
    %1189 = vst [vmem:[#allocation2 + $0xc0] sm:$0xff] %v1164
    // Predicated region
    $region30: #{tpu_custom_call.1} parent=1 // pred_check
      _
    $region31: #{tpu_custom_call.1} parent=1 // pred_check_branch
      %1191 = sbr.rel (0) target = $region33
    $region32: #{tpu_custom_call.1} parent=1 // pred_region
      %s1193 = ssub.s32 3200, 3200
      %1194 = vsyncadd [#allocation3], %s1193
      %s1195 = sshll.u32 [#allocation2], 4
      %s1196 = int_to_ptr.vmem [resolvable:$true] %s1195
      %1201 = dma.vmem_to_hbm [thread:$0]  %s1196, 3200, %s7, [#allocation3], 128, 128, 8
    $region33: #{tpu_custom_call.1} parent=1 // pred_fallthru
      _
    // Predicated region
    $region34: #{tpu_custom_call.1} parent=1 // pred_check
      _
    $region35: #{tpu_custom_call.1} parent=1 // pred_check_branch
      %1203 = sbr.rel (0) target = $region37
    $region36: #{tpu_custom_call.1} parent=1 // pred_region
      %1204 = dma.done [#allocation3], 3200
    $region37: #{tpu_custom_call.1} parent=1 // pred_fallthru
      _
    %1205 = vsyncpa [#allocation3], 1

</llo_original>
